<compile_context>
chip_gen: v6e
topology: v6e:2x2x1
jax: 0.10.0
libtpu: 0.0.40
codegen_flags: <defaults>
</compile_context>

<pallas_src>
import functools

import jax
import jax.numpy as jnp
from jax import lax
from jax.experimental import pallas as pl
from jax.experimental.pallas import tpu as pltpu

_LANES = 128
_MAX_TN = 16384   # lane-tile cap: big enough to amortize per-grid-step overhead
_P = 2            # parallel grid slices (both TCs on v7x; harmless on 1-TC chips)


def _round_up(x, m):
    return (x + m - 1) // m * m


def _pdloss_partial_kernel(x_ref, t_ref, st_ref, tt_ref, ss_ref,
                           acc_st, acc_tt, acc_ss, *,
                           n_classes, ignore_index, batch):
    # x_ref : (B, C, TN) VMEM  prediction scores (free reshape of NCHW)
    # t_ref : (B, 1, TN) VMEM  int32 labels
    # st/tt/ss_ref : (1, C, 1) VMEM  per-slice partial sums (written at last tile)
    # acc_* : (C, TN)    VMEM  vector accumulators, persist across the tile axis
    #                          (private to each core of the "parallel" axis)
    C = n_classes
    B = batch
    j = pl.program_id(1)
    tn = x_ref.shape[-1]

    @pl.when(j == 0)
    def _init():
        acc_st[...] = jnp.zeros_like(acc_st)
        acc_tt[...] = jnp.zeros_like(acc_tt)
        acc_ss[...] = jnp.zeros_like(acc_ss)

    t_all = t_ref[...]                                        # (B, 1, TN) int32
    mask = (t_all != ignore_index).astype(jnp.float32)        # ignore mask
    msum = jnp.sum(mask, axis=0)                              # sum over broadcast b' -> (1, TN)

    class_col = lax.broadcasted_iota(jnp.int32, (C, 1), 0)    # class id per sublane row
    zeros = jnp.zeros((C, tn), jnp.float32)

    def body(b, carry):
        st, tt, ss = carry
        s_b = x_ref[b].astype(jnp.float32)                    # (C, TN)
        eq = t_ref[b] == class_col                            # (C, TN) bool one-hot
        st = st + jnp.where(eq, s_b, 0.0)                     # sum_b score  * onehot
        tt = tt + jnp.where(eq, 1.0, 0.0)                     # sum_b onehot  (onehot^2 == onehot)
        ss = ss + s_b * s_b                                   # sum_b score^2
        return st, tt, ss

    st_loc, tt_loc, ss_loc = lax.fori_loop(0, B, body, (zeros, zeros, zeros),
                                           unroll=True)

    # ignore-mask factor applied ONCE per tile (hoisted out of the batch loop),
    # followed by exactly one read-modify-write per accumulator per tile.
    msum_c = jnp.broadcast_to(msum, (C, tn))
    acc_st[...] += st_loc * msum_c
    acc_tt[...] += tt_loc * msum_c
    acc_ss[...] += ss_loc * msum_c

    @pl.when(j == pl.num_programs(1) - 1)
    def _finalize():
        st_ref[0] = jnp.sum(acc_st[...], axis=1, keepdims=True)   # (C, 1)
        tt_ref[0] = jnp.sum(acc_tt[...], axis=1, keepdims=True)
        ss_ref[0] = jnp.sum(acc_ss[...], axis=1, keepdims=True)


def pdloss_pallas(inputs, target, n_classes, ignore_index, weight=None):
    """inputs: [B, C, H, W] float scores; target: [B, 1, H, W] class labels."""
    B, C, H, W = inputs.shape
    assert C == n_classes, "predict & target shape do not match"
    N = H * W

    x = inputs.reshape(B, C, N)                      # free reshape of contiguous NCHW
    t = target.reshape(B, 1, N).astype(jnp.int32)    # integer labels (exact compares)
    # TODO(synk): optionally stream scores as bf16 / labels as int8 on v5e/v6e
    # (HBM-bound there); skipped to keep bit-compatible f32 numerics.

    # --- generation-aware VMEM budget --------------------------------------
    try:
        vmem_cap = int(pltpu.get_tpu_info().vmem_capacity_bytes)
    except Exception:
        vmem_cap = 64 * 2**20
    vmem_limit = max(16 * 2**20, min(vmem_cap // 2, 64 * 2**20))

    # Lane tile: as large as useful while double-buffered inputs + the three
    # (C, tn) accumulators + elementwise-temporary headroom stay well inside
    # the scoped-VMEM budget.  Sublane padding (C -> multiple of 8) included.
    c_pad = _round_up(C, 8)
    per_lane = 4 * (2 * (B * c_pad + B * 8)   # double-buffered score + label tiles
                    + 3 * c_pad               # persistent accumulators
                    + 6 * c_pad)              # loop carries / elementwise temporaries
    tn_budget = max(_LANES, (vmem_limit // 2) // per_lane // _LANES * _LANES)
    tn_need = _round_up(pl.cdiv(N, _P), _LANES)
    tn = max(_LANES, min(_MAX_TN, tn_need, tn_budget))

    n_pad = _round_up(N, tn * _P)
    if n_pad != N:
        # scores pad with 0, labels with ignore_index -> msum == 0 there, so
        # padded lanes contribute exactly zero to all three sums.
        x = jnp.pad(x, ((0, 0), (0, 0), (0, n_pad - N)))
        t = jnp.pad(t, ((0, 0), (0, 0), (0, n_pad - N)),
                    constant_values=int(ignore_index))

    nt_per = n_pad // (tn * _P)

    kern = functools.partial(
        _pdloss_partial_kernel,
        n_classes=n_classes, ignore_index=int(ignore_index), batch=B,
    )

    out_shapes = (
        jax.ShapeDtypeStruct((_P, C, 1), jnp.float32),   # intersect partials
        jax.ShapeDtypeStruct((_P, C, 1), jnp.float32),   # y_sum partials
        jax.ShapeDtypeStruct((_P, C, 1), jnp.float32),   # z_sum partials
    )
    out_spec = pl.BlockSpec((1, C, 1), lambda p, j: (p, 0, 0))

    st_p, tt_p, ss_p = pl.pallas_call(
        kern,
        out_shape=out_shapes,
        grid_spec=pltpu.PrefetchScalarGridSpec(
            num_scalar_prefetch=0,
            grid=(_P, nt_per),
            in_specs=[
                # scores: lane-dense tile covering the full (B, C) block
                # TODO(synk): if DMA is still exposed after enlarging tn, add
                # pipeline_mode=pl.Buffered(3) here.
                pl.BlockSpec((B, C, tn), lambda p, j: (0, 0, p * nt_per + j)),
                # labels
                pl.BlockSpec((B, 1, tn), lambda p, j: (0, 0, p * nt_per + j)),
            ],
            out_specs=[out_spec, out_spec, out_spec],
            scratch_shapes=[
                pltpu.VMEM((C, tn), jnp.float32),
                pltpu.VMEM((C, tn), jnp.float32),
                pltpu.VMEM((C, tn), jnp.float32),
            ],
        ),
        compiler_params=pltpu.CompilerParams(
            dimension_semantics=("parallel", "arbitrary"),
            vmem_limit_bytes=int(vmem_limit),
        ),
    )(x, t)

    # Tiny per-class epilogue (C scalars) in plain JAX.
    intersect = jnp.sum(st_p, axis=0)[:, 0]          # (C,)
    y_sum = jnp.sum(tt_p, axis=0)[:, 0]
    z_sum = jnp.sum(ss_p, axis=0)[:, 0]

    if weight is None:
        w = jnp.ones((n_classes,), jnp.float32)
    else:
        w = jnp.asarray(weight, jnp.float32)

    smooth = 1e-5
    dice = 1.0 - (2.0 * intersect + smooth) / (z_sum + y_sum + smooth)
    return jnp.sum(dice * w) / n_classes


def pdloss_ref(inputs, target, n_classes, ignore_index, weight=None):
    """Pure-JAX reference mirroring the PyTorch forward (incl. its broadcasting)."""
    smooth = 1e-5
    mask = jnp.where(target == ignore_index, 0.0, 1.0)          # [B,1,H,W]
    if weight is None:
        weight = [1.0] * n_classes
    loss = 0.0
    for i in range(n_classes):
        s = inputs[:, i].astype(jnp.float32)                    # [B,H,W]
        tc = (target[:, 0] == i).astype(jnp.float32)            # [B,H,W]
        intersect = jnp.sum(s * tc * mask)                      # broadcasts to [B,B,H,W]
        y_sum = jnp.sum(tc * tc * mask)
        z_sum = jnp.sum(s * s * mask)
        dice = 1.0 - (2.0 * intersect + smooth) / (z_sum + y_sum + smooth)
        loss = loss + dice * weight[i]
    return loss / n_classes


if __name__ == "__main__":
    key = jax.random.PRNGKey(0)
    B, C, H, W = 2, 4, 16, 16
    n_classes = C
    ignore_index = 4  # a label value outside [0, n_classes)

    k1, k2 = jax.random.split(key)
    logits = jax.random.normal(k1, (B, C, H, W), dtype=jnp.float32)
    inputs = jax.nn.softmax(logits, axis=1)                      # prediction scores
    # labels in [0, n_classes] so some pixels hit ignore_index; stored as float
    target = jax.random.randint(k2, (B, 1, H, W), 0, n_classes + 1).astype(jnp.float32)

    # unweighted
    loss = jax.block_until_ready(pdloss_pallas(inputs, target, n_classes, ignore_index))
    ref = pdloss_ref(inputs, target, n_classes, ignore_index)
    assert jnp.allclose(loss, ref, rtol=1e-4, atol=1e-5), (float(loss), float(ref))

    # weighted
    wvec = [0.5, 1.0, 2.0, 1.5]
    loss_w = jax.block_until_ready(
        pdloss_pallas(inputs, target, n_classes, ignore_index, weight=wvec))
    ref_w = pdloss_ref(inputs, target, n_classes, ignore_index, weight=wvec)
    assert jnp.allclose(loss_w, ref_w, rtol=1e-4, atol=1e-5), (float(loss_w), float(ref_w))

    print("KERNEL_OK")
</pallas_src>

<mosaic_0001>
module attributes {stable_mosaic.version = 11 : i64} {
  func.func @_pdloss_partial_kernel(%arg0: i32, %arg1: i32, %arg2: memref<2x4x128xf32, #tpu.memory_space<vmem>>, %arg3: memref<2x1x128xi32, #tpu.memory_space<vmem>>, %arg4: memref<1x4x1xf32, #tpu.memory_space<vmem>>, %arg5: memref<1x4x1xf32, #tpu.memory_space<vmem>>, %arg6: memref<1x4x1xf32, #tpu.memory_space<vmem>>, %arg7: memref<4x128xf32, #tpu.memory_space<vmem>>, %arg8: memref<4x128xf32, #tpu.memory_space<vmem>>, %arg9: memref<4x128xf32, #tpu.memory_space<vmem>>) attributes {dimension_semantics = [#tpu.dimension_semantics<parallel>, #tpu.dimension_semantics<arbitrary>], iteration_bounds = array<i64: 2, 1>, scalar_prefetch = 0 : i64, scratch_operands = 3 : i64, tpu.core_type = #tpu.core_type<tc>, window_params = [{transform_indices = @transform_0, window_bounds = array<i64: 2, 4, 128>}, {transform_indices = @transform_1, window_bounds = array<i64: 2, 1, 128>}, {transform_indices = @transform_2, window_bounds = array<i64: 1, 4, 1>}, {transform_indices = @transform_3, window_bounds = array<i64: 1, 4, 1>}, {transform_indices = @transform_4, window_bounds = array<i64: 1, 4, 1>}]} {
    %c0_i32 = arith.constant 0 : i32
    %0 = arith.cmpi eq, %arg1, %c0_i32 : i32
    %1 = arith.extui %0 : i1 to i32
    %c0_i32_0 = arith.constant 0 : i32
    %2 = arith.cmpi ne, %1, %c0_i32_0 : i32
    scf.if %2 {
      %cst_33 = arith.constant 0.000000e+00 : f32
      %64 = vector.broadcast %cst_33 : f32 to vector<4x128xf32>
      %c0_34 = arith.constant 0 : index
      %c0_35 = arith.constant 0 : index
      %65 = vector.load %arg7[%c0_34, %c0_35] : memref<4x128xf32, #tpu.memory_space<vmem>>, vector<4x128xf32>
      tpu.vector_store %arg7[%c0_34, %c0_35], %64 {strides = array<i32>} : memref<4x128xf32, #tpu.memory_space<vmem>>, vector<4x128xf32>,
      %cst_36 = arith.constant 0.000000e+00 : f32
      %66 = vector.broadcast %cst_36 : f32 to vector<4x128xf32>
      %c0_37 = arith.constant 0 : index
      %c0_38 = arith.constant 0 : index
      %67 = vector.load %arg8[%c0_37, %c0_38] : memref<4x128xf32, #tpu.memory_space<vmem>>, vector<4x128xf32>
      tpu.vector_store %arg8[%c0_37, %c0_38], %66 {strides = array<i32>} : memref<4x128xf32, #tpu.memory_space<vmem>>, vector<4x128xf32>,
      %cst_39 = arith.constant 0.000000e+00 : f32
      %68 = vector.broadcast %cst_39 : f32 to vector<4x128xf32>
      %c0_40 = arith.constant 0 : index
      %c0_41 = arith.constant 0 : index
      %69 = vector.load %arg9[%c0_40, %c0_41] : memref<4x128xf32, #tpu.memory_space<vmem>>, vector<4x128xf32>
      tpu.vector_store %arg9[%c0_40, %c0_41], %68 {strides = array<i32>} : memref<4x128xf32, #tpu.memory_space<vmem>>, vector<4x128xf32>,
    } else {
    }
    %c0 = arith.constant 0 : index
    %c0_1 = arith.constant 0 : index
    %c0_2 = arith.constant 0 : index
    %3 = vector.load %arg3[%c0, %c0_1, %c0_2] : memref<2x1x128xi32, #tpu.memory_space<vmem>>, vector<2x1x128xi32>
    %c4_i32 = arith.constant 4 : i32
    %4 = vector.broadcast %c4_i32 : i32 to vector<2x1x128xi32>
    %5 = arith.cmpi ne, %3, %4 : vector<2x1x128xi32>
    %6 = arith.extui %5 : vector<2x1x128xi1> to vector<2x1x128xi32>
    %7 = arith.sitofp %6 : vector<2x1x128xi32> to vector<2x1x128xf32>
    %cst = arith.constant dense<0.000000e+00> : vector<1x128xf32>
    %8 = vector.multi_reduction <add>, %7, %cst [0] : vector<2x1x128xf32> to vector<1x128xf32>
    %9 = tpu.iota {dimensions = array<i32: 0>} : vector<4x1xi32>
    %cst_3 = arith.constant 0.000000e+00 : f32
    %10 = vector.broadcast %cst_3 : f32 to vector<4x128xf32>
    %c0_i32_4 = arith.constant 0 : i32
    %11 = arith.index_cast %c0_i32_4 : i32 to index
    %c0_5 = arith.constant 0 : index
    %c0_6 = arith.constant 0 : index
    %12 = vector.load %arg2[%11, %c0_5, %c0_6] : memref<2x4x128xf32, #tpu.memory_space<vmem>>, vector<1x4x128xf32>
    %13 = vector.shape_cast %12 : vector<1x4x128xf32> to vector<4x128xf32>
    %14 = arith.index_cast %c0_i32_4 : i32 to index
    %c0_7 = arith.constant 0 : index
    %c0_8 = arith.constant 0 : index
    %15 = vector.load %arg3[%14, %c0_7, %c0_8] : memref<2x1x128xi32, #tpu.memory_space<vmem>>, vector<1x1x128xi32>
    %16 = vector.shape_cast %15 : vector<1x1x128xi32> to vector<1x128xi32>
    %17 = vector.broadcast %16 : vector<1x128xi32> to vector<4x128xi32>
    %18 = vector.broadcast %9 : vector<4x1xi32> to vector<4x128xi32>
    %19 = arith.cmpi eq, %17, %18 : vector<4x128xi32>
    %cst_9 = arith.constant 0.000000e+00 : f32
    %20 = vector.broadcast %cst_9 : f32 to vector<4x128xf32>
    %21 = arith.select %19, %13, %20 : vector<4x128xi1>, vector<4x128xf32>
    %22 = arith.addf %10, %21 : vector<4x128xf32>
    %cst_10 = arith.constant 1.000000e+00 : f32
    %cst_11 = arith.constant 0.000000e+00 : f32
    %23 = vector.broadcast %cst_10 : f32 to vector<4x128xf32>
    %24 = vector.broadcast %cst_11 : f32 to vector<4x128xf32>
    %25 = arith.select %19, %23, %24 : vector<4x128xi1>, vector<4x128xf32>
    %26 = arith.addf %10, %25 : vector<4x128xf32>
    %27 = arith.mulf %13, %13 : vector<4x128xf32>
    %28 = arith.addf %10, %27 : vector<4x128xf32>
    %c1_i32 = arith.constant 1 : i32
    %29 = arith.index_cast %c1_i32 : i32 to index
    %c0_12 = arith.constant 0 : index
    %c0_13 = arith.constant 0 : index
    %30 = vector.load %arg2[%29, %c0_12, %c0_13] : memref<2x4x128xf32, #tpu.memory_space<vmem>>, vector<1x4x128xf32>
    %31 = vector.shape_cast %30 : vector<1x4x128xf32> to vector<4x128xf32>
    %32 = arith.index_cast %c1_i32 : i32 to index
    %c0_14 = arith.constant 0 : index
    %c0_15 = arith.constant 0 : index
    %33 = vector.load %arg3[%32, %c0_14, %c0_15] : memref<2x1x128xi32, #tpu.memory_space<vmem>>, vector<1x1x128xi32>
    %34 = vector.shape_cast %33 : vector<1x1x128xi32> to vector<1x128xi32>
    %35 = vector.broadcast %34 : vector<1x128xi32> to vector<4x128xi32>
    %36 = vector.broadcast %9 : vector<4x1xi32> to vector<4x128xi32>
    %37 = arith.cmpi eq, %35, %36 : vector<4x128xi32>
    %cst_16 = arith.constant 0.000000e+00 : f32
    %38 = vector.broadcast %cst_16 : f32 to vector<4x128xf32>
    %39 = arith.select %37, %31, %38 : vector<4x128xi1>, vector<4x128xf32>
    %40 = arith.addf %22, %39 : vector<4x128xf32>
    %cst_17 = arith.constant 1.000000e+00 : f32
    %cst_18 = arith.constant 0.000000e+00 : f32
    %41 = vector.broadcast %cst_17 : f32 to vector<4x128xf32>
    %42 = vector.broadcast %cst_18 : f32 to vector<4x128xf32>
    %43 = arith.select %37, %41, %42 : vector<4x128xi1>, vector<4x128xf32>
    %44 = arith.addf %26, %43 : vector<4x128xf32>
    %45 = arith.mulf %31, %31 : vector<4x128xf32>
    %46 = arith.addf %28, %45 : vector<4x128xf32>
    %c2_i32 = arith.constant 2 : i32
    %47 = vector.shape_cast %8 : vector<1x128xf32> to vector<1x128xf32>
    %48 = vector.broadcast %47 : vector<1x128xf32> to vector<4x128xf32>
    %c0_19 = arith.constant 0 : index
    %c0_20 = arith.constant 0 : index
    %49 = vector.load %arg7[%c0_19, %c0_20] : memref<4x128xf32, #tpu.memory_space<vmem>>, vector<4x128xf32>
    %50 = arith.mulf %40, %48 : vector<4x128xf32>
    %51 = arith.addf %49, %50 : vector<4x128xf32>
    %c0_21 = arith.constant 0 : index
    %c0_22 = arith.constant 0 : index
    %52 = vector.load %arg7[%c0_21, %c0_22] : memref<4x128xf32, #tpu.memory_space<vmem>>, vector<4x128xf32>
    tpu.vector_store %arg7[%c0_21, %c0_22], %51 {strides = array<i32>} : memref<4x128xf32, #tpu.memory_space<vmem>>, vector<4x128xf32>,
    %c0_23 = arith.constant 0 : index
    %c0_24 = arith.constant 0 : index
    %53 = vector.load %arg8[%c0_23, %c0_24] : memref<4x128xf32, #tpu.memory_space<vmem>>, vector<4x128xf32>
    %54 = arith.mulf %44, %48 : vector<4x128xf32>
    %55 = arith.addf %53, %54 : vector<4x128xf32>
    %c0_25 = arith.constant 0 : index
    %c0_26 = arith.constant 0 : index
    %56 = vector.load %arg8[%c0_25, %c0_26] : memref<4x128xf32, #tpu.memory_space<vmem>>, vector<4x128xf32>
    tpu.vector_store %arg8[%c0_25, %c0_26], %55 {strides = array<i32>} : memref<4x128xf32, #tpu.memory_space<vmem>>, vector<4x128xf32>,
    %c0_27 = arith.constant 0 : index
    %c0_28 = arith.constant 0 : index
    %57 = vector.load %arg9[%c0_27, %c0_28] : memref<4x128xf32, #tpu.memory_space<vmem>>, vector<4x128xf32>
    %58 = arith.mulf %46, %48 : vector<4x128xf32>
    %59 = arith.addf %57, %58 : vector<4x128xf32>
    %c0_29 = arith.constant 0 : index
    %c0_30 = arith.constant 0 : index
    %60 = vector.load %arg9[%c0_29, %c0_30] : memref<4x128xf32, #tpu.memory_space<vmem>>, vector<4x128xf32>
    tpu.vector_store %arg9[%c0_29, %c0_30], %59 {strides = array<i32>} : memref<4x128xf32, #tpu.memory_space<vmem>>, vector<4x128xf32>,
    %c0_i32_31 = arith.constant 0 : i32
    %61 = arith.cmpi eq, %arg1, %c0_i32_31 : i32
    %62 = arith.extui %61 : i1 to i32
    %c0_i32_32 = arith.constant 0 : i32
    %63 = arith.cmpi ne, %62, %c0_i32_32 : i32
    scf.if %63 {
      %c0_33 = arith.constant 0 : index
      %c0_34 = arith.constant 0 : index
      %64 = vector.load %arg7[%c0_33, %c0_34] : memref<4x128xf32, #tpu.memory_space<vmem>>, vector<4x128xf32>
      %cst_35 = arith.constant dense<0.000000e+00> : vector<4xf32>
      %65 = vector.multi_reduction <add>, %64, %cst_35 [1] : vector<4x128xf32> to vector<4xf32>
      %66 = vector.shape_cast %65 : vector<4xf32> to vector<4x1xf32>
      %c0_36 = arith.constant 0 : index
      %c0_37 = arith.constant 0 : index
      %c0_38 = arith.constant 0 : index
      %67 = vector.load %arg4[%c0_36, %c0_37, %c0_38] : memref<1x4x1xf32, #tpu.memory_space<vmem>>, vector<1x4x1xf32>
      %68 = vector.shape_cast %67 : vector<1x4x1xf32> to vector<4x1xf32>
      %69 = vector.shape_cast %66 : vector<4x1xf32> to vector<1x4x1xf32>
      tpu.vector_store %arg4[%c0_36, %c0_37, %c0_38], %69 {strides = array<i32>} : memref<1x4x1xf32, #tpu.memory_space<vmem>>, vector<1x4x1xf32>,
      %c0_39 = arith.constant 0 : index
      %c0_40 = arith.constant 0 : index
      %70 = vector.load %arg8[%c0_39, %c0_40] : memref<4x128xf32, #tpu.memory_space<vmem>>, vector<4x128xf32>
      %cst_41 = arith.constant dense<0.000000e+00> : vector<4xf32>
      %71 = vector.multi_reduction <add>, %70, %cst_41 [1] : vector<4x128xf32> to vector<4xf32>
      %72 = vector.shape_cast %71 : vector<4xf32> to vector<4x1xf32>
      %c0_42 = arith.constant 0 : index
      %c0_43 = arith.constant 0 : index
      %c0_44 = arith.constant 0 : index
      %73 = vector.load %arg5[%c0_42, %c0_43, %c0_44] : memref<1x4x1xf32, #tpu.memory_space<vmem>>, vector<1x4x1xf32>
      %74 = vector.shape_cast %73 : vector<1x4x1xf32> to vector<4x1xf32>
      %75 = vector.shape_cast %72 : vector<4x1xf32> to vector<1x4x1xf32>
      tpu.vector_store %arg5[%c0_42, %c0_43, %c0_44], %75 {strides = array<i32>} : memref<1x4x1xf32, #tpu.memory_space<vmem>>, vector<1x4x1xf32>,
      %c0_45 = arith.constant 0 : index
      %c0_46 = arith.constant 0 : index
      %76 = vector.load %arg9[%c0_45, %c0_46] : memref<4x128xf32, #tpu.memory_space<vmem>>, vector<4x128xf32>
      %cst_47 = arith.constant dense<0.000000e+00> : vector<4xf32>
      %77 = vector.multi_reduction <add>, %76, %cst_47 [1] : vector<4x128xf32> to vector<4xf32>
      %78 = vector.shape_cast %77 : vector<4xf32> to vector<4x1xf32>
      %c0_48 = arith.constant 0 : index
      %c0_49 = arith.constant 0 : index
      %c0_50 = arith.constant 0 : index
      %79 = vector.load %arg6[%c0_48, %c0_49, %c0_50] : memref<1x4x1xf32, #tpu.memory_space<vmem>>, vector<1x4x1xf32>
      %80 = vector.shape_cast %79 : vector<1x4x1xf32> to vector<4x1xf32>
      %81 = vector.shape_cast %78 : vector<4x1xf32> to vector<1x4x1xf32>
      tpu.vector_store %arg6[%c0_48, %c0_49, %c0_50], %81 {strides = array<i32>} : memref<1x4x1xf32, #tpu.memory_space<vmem>>, vector<1x4x1xf32>,
    } else {
    }
    return
  }
  func.func @transform_0(%arg0: i32, %arg1: i32) -> (i32, i32, i32) {
    %c1_i32 = arith.constant 1 : i32
    %0 = arith.muli %arg0, %c1_i32 : i32
    %1 = arith.addi %0, %arg1 : i32
    %c0_i32 = arith.constant 0 : i32
    %c0_i32_0 = arith.constant 0 : i32
    %c0_i32_1 = arith.constant 0 : i32
    return %c0_i32, %c0_i32_0, %1 : i32, i32, i32
  }
  func.func @transform_1(%arg0: i32, %arg1: i32) -> (i32, i32, i32) {
    %c1_i32 = arith.constant 1 : i32
    %0 = arith.muli %arg0, %c1_i32 : i32
    %1 = arith.addi %0, %arg1 : i32
    %c0_i32 = arith.constant 0 : i32
    %c0_i32_0 = arith.constant 0 : i32
    %c0_i32_1 = arith.constant 0 : i32
    return %c0_i32, %c0_i32_0, %1 : i32, i32, i32
  }
  func.func @transform_2(%arg0: i32, %arg1: i32) -> (i32, i32, i32) {
    %c0_i32 = arith.constant 0 : i32
    %c0_i32_0 = arith.constant 0 : i32
    %c0_i32_1 = arith.constant 0 : i32
    return %arg0, %c0_i32, %c0_i32_0 : i32, i32, i32
  }
  func.func @transform_3(%arg0: i32, %arg1: i32) -> (i32, i32, i32) {
    %c0_i32 = arith.constant 0 : i32
    %c0_i32_0 = arith.constant 0 : i32
    %c0_i32_1 = arith.constant 0 : i32
    return %arg0, %c0_i32, %c0_i32_0 : i32, i32, i32
  }
  func.func @transform_4(%arg0: i32, %arg1: i32) -> (i32, i32, i32) {
    %c0_i32 = arith.constant 0 : i32
    %c0_i32_0 = arith.constant 0 : i32
    %c0_i32_1 = arith.constant 0 : i32
    return %arg0, %c0_i32, %c0_i32_0 : i32, i32, i32
  }
}

</mosaic_0001>

<llo_original>
// kernel: tpu_custom_call.1
$region0: #{tpu_custom_call.1}
  #allocation0 [shape = 'u32[]', space=smem, size = 0x4, offset = 0x4, fixed_abs, tag = 'smem constant byte address 0x4 - core index']
  #allocation1 [shape = 'u32[144,128]{1,0:T(1,128)}', space=vmem, size = 0x12000, scoped, tag = 'internal scratch']
  #allocation2 [shape = 'f32[4,128]{1,0:T(4,128)}', space=vmem, size = 0x800, scoped, tag = 'scratch operand']
  #allocation3 [shape = 'f32[4,128]{1,0:T(4,128)}', space=vmem, size = 0x800, scoped, tag = 'scratch operand']
  #allocation4 [shape = 'f32[4,128]{1,0:T(4,128)}', space=vmem, size = 0x800, scoped, tag = 'scratch operand']
  %s0 = inlined_call_operand.hbm [shape: f32[2,4,256], index: 0, kind: input, shape index: {}]
  %s1 = inlined_call_operand.hbm [shape: s32[2,1,256], index: 1, kind: input, shape index: {}]
  %s2 = inlined_call_operand.vmem [shape: f32[2,4,1], index: 2, kind: output, shape index: {0}]
  %s3 = inlined_call_operand.vmem [shape: f32[2,4,1], index: 3, kind: output, shape index: {1}]
  %s4 = inlined_call_operand.vmem [shape: f32[2,4,1], index: 4, kind: output, shape index: {2}]
  %5 = xla_tuple %s2, %s3, %s4
  %s6 = sld [smem:[#allocation0]]
  $region73: #{tpu_custom_call.1} parent=0
    _
  %s8 = ssub.s32 1, %s6
  %s9 = scalar_select 0, %s8, %s6
  $region1: #{tpu_custom_call.1} parent=0
    #allocation5 [shape = 'u8[8192]{0}', space=vmem, size = 0x2000, scoped, tag = 'input window, operand 0']
    #allocation6 [shape = 's32[2]{0}', space=sflag, size = 0x8, scoped, tag = 'scoped memory for tpu_custom_call.1']
    #allocation7 [shape = 'u8[2048]{0}', space=vmem, size = 0x800, scoped, tag = 'input window, operand 1']
    #allocation8 [shape = 's32[2]{0}', space=sflag, size = 0x8, scoped, tag = 'scoped memory for tpu_custom_call.1']
    %10 = vsyncpa [#allocation6], 0
    %s11 = scalar_lea.sflag [#allocation6], 1
    %12 = vsyncpa %s11, 0
    %13 = vsyncpa [#allocation8], 0
    %s14 = scalar_lea.sflag [#allocation8], 1
    %15 = vsyncpa %s14, 0
    loop: start=0, step=1, limit=4
    $region2: #{tpu_custom_call.1} parent=1 // loop_pre_header
      _
    $region3: #{tpu_custom_call.1} parent=1 // loop_header
      %s17 = sphi 0, %s21
      %p18 = scmp.ge.s32.totalorder %s17, 4
      %s24 = sphi 0, %s36
      %s25 = sphi 0, %s32
      %s26 = sphi 0, %s24
      %s27 = sphi 0, %s25
      %s28 = sphi 0, %s26
      %s29 = sphi 0, %s27
      %s41 = sphi 0, %s43
      %s44 = sphi 0, %s41
      %s45 = sphi 0, %s44
      %s61 = sphi 0, %s45
      %s69 = sphi 0, %s71
      %s72 = sphi 0, %s69
      %s73 = sphi 0, %s72
      %s89 = sphi 0, %s73
      %s95 = sphi 0, %s97
      %s98 = sphi 0, %s95
      %s99 = sphi 0, %s98
      %s115 = sphi 0, %s99
      %s121 = sphi 0, %s123
      %s124 = sphi 0, %s121
      %s125 = sphi 0, %s124
      %s141 = sphi 0, %s125
      %s147 = sphi 0, %s149
      %s150 = sphi 0, %s147
      %s151 = sphi 0, %s150
      %s167 = sphi 0, %s151
    $region4: #{tpu_custom_call.1} parent=1 // loop_header_branch
      %20 = sbr.rel (%p18) target = $region8
    $region5: #{tpu_custom_call.1} parent=1 // loop_body
      %s22 = ssub.s32 %s17, 1
      %s23 = ssub.s32 %s17, 2
      %s30 = sadd.s32 1, %s25
      %p31 = scmp.ge.s32.totalorder %s30, 1
      %s32 = scalar_select %p31, 0, %s30
      %s33 = sadd.s32 1, %s24
      %s34 = scalar_select %p31, %s33, %s24
      %p35 = scmp.ge.s32.totalorder %s34, 2
      %s36 = scalar_select %p35, 0, %s34
      %s37 = sadd.s32 %s24, %s25
      %s38 = sadd.s32 %s36, %s32
      %s39 = ssub.s32 %s37, %s38
      %p40 = scmp.eq.s32.totalorder %s39, 0
      %s42 = sadd.s32 %s41, 1
      %s43 = scalar_select %p40, %s41, %s42
      %p46 = pneg %p40
      %p47 = scmp.eq.s32.totalorder %s17, 1
      %p48 = por %p46, %p47
      %p49 = scmp.ne.s32.totalorder %s41, %s44
      %p50 = scmp.eq.s32.totalorder %s17, 0
      %p51 = por %p49, %p50
      %p52 = scmp.ne.s32.totalorder %s41, %s44
      %p53 = scmp.eq.s32.totalorder %s22, 1
      %p54 = por %p52, %p53
      %p55 = scmp.ne.s32.totalorder %s44, %s45
      %p56 = scmp.eq.s32.totalorder %s22, 0
      %p57 = por %p55, %p56
      %p58 = scmp.ne.s32.totalorder %s44, %s45
      %p59 = scmp.eq.s32.totalorder %s23, 1
      %p60 = por %p58, %p59
      %p62 = scmp.ne.s32.totalorder %s45, %s61
      %p63 = scmp.eq.s32.totalorder %s23, 0
      %p64 = por %p62, %p63
      %s65 = sadd.s32 %s24, %s25
      %s66 = sadd.s32 %s36, %s32
      %s67 = ssub.s32 %s65, %s66
      %p68 = scmp.eq.s32.totalorder %s67, 0
      %s70 = sadd.s32 %s69, 1
      %s71 = scalar_select %p68, %s69, %s70
      %p74 = pneg %p68
      %p75 = scmp.eq.s32.totalorder %s17, 1
      %p76 = por %p74, %p75
      %p77 = scmp.ne.s32.totalorder %s69, %s72
      %p78 = scmp.eq.s32.totalorder %s17, 0
      %p79 = por %p77, %p78
      %p80 = scmp.ne.s32.totalorder %s69, %s72
      %p81 = scmp.eq.s32.totalorder %s22, 1
      %p82 = por %p80, %p81
      %p83 = scmp.ne.s32.totalorder %s72, %s73
      %p84 = scmp.eq.s32.totalorder %s22, 0
      %p85 = por %p83, %p84
      %p86 = scmp.ne.s32.totalorder %s72, %s73
      %p87 = scmp.eq.s32.totalorder %s23, 1
      %p88 = por %p86, %p87
      %p90 = scmp.ne.s32.totalorder %s73, %s89
      %p91 = scmp.eq.s32.totalorder %s23, 0
      %p92 = por %p90, %p91
      %s93 = ssub.s32 %s24, %s36
      %p94 = scmp.eq.s32.totalorder %s93, 0
      %s96 = sadd.s32 %s95, 1
      %s97 = scalar_select %p94, %s95, %s96
      %p100 = pneg %p94
      %p101 = scmp.eq.s32.totalorder %s17, 1
      %p102 = por %p100, %p101
      %p103 = scmp.ne.s32.totalorder %s95, %s98
      %p104 = scmp.eq.s32.totalorder %s17, 0
      %p105 = por %p103, %p104
      %p106 = scmp.ne.s32.totalorder %s95, %s98
      %p107 = scmp.eq.s32.totalorder %s22, 1
      %p108 = por %p106, %p107
      %p109 = scmp.ne.s32.totalorder %s98, %s99
      %p110 = scmp.eq.s32.totalorder %s22, 0
      %p111 = por %p109, %p110
      %p112 = scmp.ne.s32.totalorder %s98, %s99
      %p113 = scmp.eq.s32.totalorder %s23, 1
      %p114 = por %p112, %p113
      %p116 = scmp.ne.s32.totalorder %s99, %s115
      %p117 = scmp.eq.s32.totalorder %s23, 0
      %p118 = por %p116, %p117
      %s119 = ssub.s32 %s24, %s36
      %p120 = scmp.eq.s32.totalorder %s119, 0
      %s122 = sadd.s32 %s121, 1
      %s123 = scalar_select %p120, %s121, %s122
      %p126 = pneg %p120
      %p127 = scmp.eq.s32.totalorder %s17, 1
      %p128 = por %p126, %p127
      %p129 = scmp.ne.s32.totalorder %s121, %s124
      %p130 = scmp.eq.s32.totalorder %s17, 0
      %p131 = por %p129, %p130
      %p132 = scmp.ne.s32.totalorder %s121, %s124
      %p133 = scmp.eq.s32.totalorder %s22, 1
      %p134 = por %p132, %p133
      %p135 = scmp.ne.s32.totalorder %s124, %s125
      %p136 = scmp.eq.s32.totalorder %s22, 0
      %p137 = por %p135, %p136
      %p138 = scmp.ne.s32.totalorder %s124, %s125
      %p139 = scmp.eq.s32.totalorder %s23, 1
      %p140 = por %p138, %p139
      %p142 = scmp.ne.s32.totalorder %s125, %s141
      %p143 = scmp.eq.s32.totalorder %s23, 0
      %p144 = por %p142, %p143
      %s145 = ssub.s32 %s24, %s36
      %p146 = scmp.eq.s32.totalorder %s145, 0
      %s148 = sadd.s32 %s147, 1
      %s149 = scalar_select %p146, %s147, %s148
      %p152 = pneg %p146
      %p153 = scmp.eq.s32.totalorder %s17, 1
      %p154 = por %p152, %p153
      %p155 = scmp.ne.s32.totalorder %s147, %s150
      %p156 = scmp.eq.s32.totalorder %s17, 0
      %p157 = por %p155, %p156
      %p158 = scmp.ne.s32.totalorder %s147, %s150
      %p159 = scmp.eq.s32.totalorder %s22, 1
      %p160 = por %p158, %p159
      %p161 = scmp.ne.s32.totalorder %s150, %s151
      %p162 = scmp.eq.s32.totalorder %s22, 0
      %p163 = por %p161, %p162
      %p164 = scmp.ne.s32.totalorder %s150, %s151
      %p165 = scmp.eq.s32.totalorder %s23, 1
      %p166 = por %p164, %p165
      %p168 = scmp.ne.s32.totalorder %s151, %s167
      %p169 = scmp.eq.s32.totalorder %s23, 0
      %p170 = por %p168, %p169
      %p171 = scmp.le.s32.totalorder 1, %s17
      %p172 = scmp.lt.s32.totalorder %s17, 3
      %p173 = pnand %p171, %p172
      %p174 = pneg %p173
      // Predicated region
      $region9: #{tpu_custom_call.1} parent=5 // pred_check
        _
      $region10: #{tpu_custom_call.1} parent=5 // pred_check_branch
        %176 = sbr.rel (%p173) target = $region12
      $region11: #{tpu_custom_call.1} parent=5 // pred_region
        %s177 = ssub.s32 %s17, 1
      $region12: #{tpu_custom_call.1} parent=5 // pred_fallthru
        _
      %p178 = scmp.lt.s32.totalorder %s17, 2
      // Predicated region
      $region13: #{tpu_custom_call.1} parent=5 // pred_check
        %p179 = pneg %p178
      $region14: #{tpu_custom_call.1} parent=5 // pred_check_branch
        %181 = sbr.rel (%p179) target = $region16
      $region15: #{tpu_custom_call.1} parent=5 // pred_region
        // Predicated region
        $region17: #{tpu_custom_call.1} parent=15 // pred_check
          %p182 = pneg %p51
        $region18: #{tpu_custom_call.1} parent=15 // pred_check_branch
          %184 = sbr.rel (%p182) target = $region20
        $region19: #{tpu_custom_call.1} parent=15 // pred_region
          %s185 = sand.u32 %s41, 1
          %s186 = scalar_lea.sflag [#allocation6], %s185
          %s187 = sand.u32 %s41, 1
          %s188 = smul.addr %s187, 8
          %s189 = scalar_lea.vmem [#allocation5], %s188
          %s190 = sadd.s32 %s24, %s25
          %s192 = ssub.s32 128, 128
          %193 = vsyncadd %s186, %s192
          %s194 = smul.addr %s190, 64
          %s195 = scalar_lea.hbm %s0, %s194
          %s196 = sshll.u32 %s189, 4
          %s197 = int_to_ptr.vmem [resolvable:$true] %s196
          %202 = dma.hbm_to_vmem [thread:$0]  %s195, 128, %s197, %s186, 128, 64, 4
        $region20: #{tpu_custom_call.1} parent=15 // pred_fallthru
          _
        // Predicated region
        $region21: #{tpu_custom_call.1} parent=15 // pred_check
          %p203 = pneg %p79
        $region22: #{tpu_custom_call.1} parent=15 // pred_check_branch
          %205 = sbr.rel (%p203) target = $region24
        $region23: #{tpu_custom_call.1} parent=15 // pred_region
          %s206 = sand.u32 %s69, 1
          %s207 = scalar_lea.sflag [#allocation8], %s206
          %s208 = sand.u32 %s69, 1
          %s209 = smul.addr %s208, 2
          %s210 = scalar_lea.vmem [#allocation7], %s209
          %s211 = sadd.s32 %s24, %s25
          %s213 = ssub.s32 32, 32
          %214 = vsyncadd %s207, %s213
          %s215 = smul.addr %s211, 16
          %s216 = scalar_lea.hbm %s1, %s215
          %s217 = sshll.u32 %s210, 4
          %s218 = int_to_ptr.vmem [resolvable:$true] %s217
          %223 = dma.hbm_to_vmem [thread:$0]  %s216, 32, %s218, %s207, 32, 16, 1
        $region24: #{tpu_custom_call.1} parent=15 // pred_fallthru
          _
      $region16: #{tpu_custom_call.1} parent=5 // pred_fallthru
        _
      %p224 = scmp.le.s32.totalorder 1, %s17
      %p225 = scmp.lt.s32.totalorder %s17, 3
      %p226 = pnand %p224, %p225
      %p227 = pneg %p226
      // Predicated region
      $region25: #{tpu_custom_call.1} parent=5 // pred_check
        _
      $region26: #{tpu_custom_call.1} parent=5 // pred_check_branch
        %229 = sbr.rel (%p226) target = $region28
      $region27: #{tpu_custom_call.1} parent=5 // pred_region
        %s230 = ssub.s32 %s17, 1
        %s231 = sand.u32 %s44, 1
        %s232 = scalar_lea.sflag [#allocation6], %s231
        %s233 = sand.u32 %s44, 1
        %s234 = smul.addr %s233, 8
        %s235 = scalar_lea.vmem [#allocation5], %s234
        // Predicated region
        $region29: #{tpu_custom_call.1} parent=27 // pred_check
          %p236 = pneg %p57
        $region30: #{tpu_custom_call.1} parent=27 // pred_check_branch
          %238 = sbr.rel (%p236) target = $region32
        $region31: #{tpu_custom_call.1} parent=27 // pred_region
          %239 = dma.done %s232, 128
        $region32: #{tpu_custom_call.1} parent=27 // pred_fallthru
          _
        %s240 = sand.u32 %s72, 1
        %s241 = scalar_lea.sflag [#allocation8], %s240
        %s242 = sand.u32 %s72, 1
        %s243 = smul.addr %s242, 2
        %s244 = scalar_lea.vmem [#allocation7], %s243
        // Predicated region
        $region33: #{tpu_custom_call.1} parent=27 // pred_check
          %p245 = pneg %p85
        $region34: #{tpu_custom_call.1} parent=27 // pred_check_branch
          %247 = sbr.rel (%p245) target = $region36
        $region35: #{tpu_custom_call.1} parent=27 // pred_region
          %248 = dma.done %s241, 32
        $region36: #{tpu_custom_call.1} parent=27 // pred_fallthru
          _
        %s249 = sand.u32 %s44, 1
        %s250 = scalar_lea.sflag [#allocation6], %s249
        %s251 = sand.u32 %s44, 1
        %s252 = smul.addr %s251, 8
        %s253 = scalar_lea.vmem [#allocation5], %s252
        %p254 = pneg %p57
        %p255 = pneg %p54
        %s256 = sand.u32 %s72, 1
        %s257 = scalar_lea.sflag [#allocation8], %s256
        %s258 = sand.u32 %s72, 1
        %s259 = smul.addr %s258, 2
        %s260 = scalar_lea.vmem [#allocation7], %s259
        %p261 = pneg %p85
        %p262 = pneg %p82
        %p263 = pneg %p111
        %p264 = pneg %p108
        %p265 = scmp.lt.s32.totalorder %s26, 1
        %s266 = scalar_select %p265, %s26, 1
        %s267 = smul.addr %s266, 4
        %s268 = scalar_lea.vmem %s2, %s267
        %p269 = pneg %p137
        %p270 = pneg %p134
        %p271 = scmp.lt.s32.totalorder %s26, 1
        %s272 = scalar_select %p271, %s26, 1
        %s273 = smul.addr %s272, 4
        %s274 = scalar_lea.vmem %s3, %s273
        %p275 = pneg %p163
        %p276 = pneg %p160
        %p277 = scmp.lt.s32.totalorder %s26, 1
        %s278 = scalar_select %p277, %s26, 1
        %s279 = smul.addr %s278, 4
        %s280 = scalar_lea.vmem %s4, %s279
        %s281 = sadd.s32 %s26, %s27
        %s282 = sadd.s32 %s26, %s27
        %p283 = scmp.lt.s32.totalorder %s26, 1
        %s284 = scalar_select %p283, %s26, 1
        %s285 = smul.addr %s284, 4
        %s286 = scalar_lea.vmem %s2, %s285
        %p287 = scmp.lt.s32.totalorder %s26, 1
        %s288 = scalar_select %p287, %s26, 1
        %s289 = smul.addr %s288, 4
        %s290 = scalar_lea.vmem %s3, %s289
        %p291 = scmp.lt.s32.totalorder %s26, 1
        %s292 = scalar_select %p291, %s26, 1
        %s293 = smul.addr %s292, 4
        %s294 = scalar_lea.vmem %s4, %s293
        %p295 = scmp.eq.s32.totalorder %s27, 0
        // Predicated region
        $region37: #{tpu_custom_call.1} parent=27 // pred_check
          %p296 = pneg %p295
        $region38: #{tpu_custom_call.1} parent=27 // pred_check_branch
          %298 = sbr.rel (%p296) target = $region40
        $region39: #{tpu_custom_call.1} parent=27 // pred_region
          %299 = vst [vmem:[#allocation2] sm:$0xf] 0.0
          %300 = vst [vmem:[#allocation3] sm:$0xf] 0.0
          %301 = vst [vmem:[#allocation4] sm:$0xf] 0.0
        $region40: #{tpu_custom_call.1} parent=27 // pred_fallthru
          _
        %v302 = vld [vmem:[%s244] sm:$0x1]
        %v303 = vld [vmem:[%s244 + $0x1] sm:$0x1]
        %vm304 = vcmp.ne.s32.totalorder %v302, 4
        %vm305 = vcmp.ne.s32.totalorder %v303, 4
        %v306 = vsel %vm304, 1, 0
        %v307 = vsel %vm305, 1, 0
        %v308 = vcvt.s32.f32 %v306
        %v309 = vcvt.s32.f32 %v307
        %vm310 = vcmask 1040384
        %v311 = vsel %vm310, %v308, 0.0
        %v312 = vsel %vm310, %v309, 0.0
        %v313 = vadd.f32 %v311, %v312
        %v314 = vlaneseq
        %v315 = vshrl.u32 %v314, 7
        %v316 = vld [vmem:[%s235] sm:$0xf]
        %v317 = vld [vmem:[%s244] sm:$0x1]
        %v318 = vlaneseq
        %v319 = vshrl.u32 %v318, 7
        %v320 = vsub.s32 0, %v319
        %v321 = vrot.slane %v317, %v320
        %vm322 = vcmp.eq.s32.totalorder %v321, %v315
        %v323 = vsel %vm322, %v316, 0.0
        %v324 = vadd.f32 %v323, 0.0
        %v325 = vsel %vm322, 1.0, 0.0
        %v326 = vadd.f32 %v325, 0.0
        %v327 = vmul.f32 %v316, %v316
        %v328 = vadd.f32 %v327, 0.0
        %s329 = scalar_lea.vmem %s235, 4 [#allocation5]
        %v330 = vld [vmem:[%s329] sm:$0xf]
        %s331 = scalar_lea.vmem %s244, 1 [#allocation7]
        %v332 = vld [vmem:[%s331] sm:$0x1]
        %v333 = vlaneseq
        %v334 = vshrl.u32 %v333, 7
        %v335 = vsub.s32 0, %v334
        %v336 = vrot.slane %v332, %v335
        %vm337 = vcmp.eq.s32.totalorder %v336, %v315
        %v338 = vsel %vm337, %v330, 0.0
        %v339 = vadd.f32 %v324, %v338
        %v340 = vsel %vm337, 1.0, 0.0
        %v341 = vadd.f32 %v326, %v340
        %v342 = vmul.f32 %v330, %v330
        %v343 = vadd.f32 %v328, %v342
        %v344 = vlaneseq
        %v345 = vshrl.u32 %v344, 7
        %v346 = vsub.s32 0, %v345
        %v347 = vrot.slane %v313, %v346
        %v348 = vld [vmem:[#allocation2] sm:$0xf]
        %v349 = vmul.f32 %v339, %v347
        %v350 = vadd.f32 %v348, %v349
        %351 = vst [vmem:[#allocation2] sm:$0xf] %v350
        %v352 = vld [vmem:[#allocation3] sm:$0xf]
        %v353 = vmul.f32 %v341, %v347
        %v354 = vadd.f32 %v352, %v353
        %355 = vst [vmem:[#allocation3] sm:$0xf] %v354
        %v356 = vld [vmem:[#allocation4] sm:$0xf]
        %v357 = vmul.f32 %v343, %v347
        %v358 = vadd.f32 %v356, %v357
        %359 = vst [vmem:[#allocation4] sm:$0xf] %v358
        // Predicated region
        $region41: #{tpu_custom_call.1} parent=27 // pred_check
          %p360 = pneg %p295
        $region42: #{tpu_custom_call.1} parent=27 // pred_check_branch
          %362 = sbr.rel (%p360) target = $region44
        $region43: #{tpu_custom_call.1} parent=27 // pred_region
          %v363 = vld [vmem:[#allocation2] sm:$0xf]
          %vm364 = vcmask 1043456
          %v365 = vsel %vm364, %v363, 0.0
          %366 = vadd.xlane.f32.xlu0 %v365
          %v367 = vpop.xlane.xlu0 %366
          %vm368 = vcmask 3072
          %369 = vst.msk [vmem:[%s286] sm:$0xf] %vm368, %v367
          %v370 = vld [vmem:[#allocation3] sm:$0xf]
          %v371 = vsel %vm364, %v370, 0.0
          %372 = vadd.xlane.f32.xlu0 %v371
          %v373 = vpop.xlane.xlu0 %372
          %374 = vst.msk [vmem:[%s290] sm:$0xf] %vm368, %v373
          %v375 = vld [vmem:[#allocation4] sm:$0xf]
          %v376 = vsel %vm364, %v375, 0.0
          %377 = vadd.xlane.f32.xlu0 %v376
          %v378 = vpop.xlane.xlu0 %377
          %379 = vst.msk [vmem:[%s294] sm:$0xf] %vm368, %v378
        $region44: #{tpu_custom_call.1} parent=27 // pred_fallthru
          _
        %p380 = scmp.lt.s32.totalorder %s26, 1
        %s381 = scalar_select %p380, %s26, 1
        %s382 = smul.addr %s381, 4
        %s383 = scalar_lea.vmem %s2, %s382
        %p384 = scmp.lt.s32.totalorder %s26, 1
        %s385 = scalar_select %p384, %s26, 1
        %s386 = smul.addr %s385, 4
        %s387 = scalar_lea.vmem %s3, %s386
        %p388 = scmp.lt.s32.totalorder %s26, 1
        %s389 = scalar_select %p388, %s26, 1
        %s390 = smul.addr %s389, 4
        %s391 = scalar_lea.vmem %s4, %s390
        // Predicated region
        $region45: #{tpu_custom_call.1} parent=27 // pred_check
          %p392 = pneg %p108
        $region46: #{tpu_custom_call.1} parent=27 // pred_check_branch
          %394 = sbr.rel (%p392) target = $region48
        $region47: #{tpu_custom_call.1} parent=27 // pred_region
          _
        $region48: #{tpu_custom_call.1} parent=27 // pred_fallthru
          _
        // Predicated region
        $region49: #{tpu_custom_call.1} parent=27 // pred_check
          %p395 = pneg %p134
        $region50: #{tpu_custom_call.1} parent=27 // pred_check_branch
          %397 = sbr.rel (%p395) target = $region52
        $region51: #{tpu_custom_call.1} parent=27 // pred_region
          _
        $region52: #{tpu_custom_call.1} parent=27 // pred_fallthru
          _
        // Predicated region
        $region53: #{tpu_custom_call.1} parent=27 // pred_check
          %p398 = pneg %p160
        $region54: #{tpu_custom_call.1} parent=27 // pred_check_branch
          %400 = sbr.rel (%p398) target = $region56
        $region55: #{tpu_custom_call.1} parent=27 // pred_region
          _
        $region56: #{tpu_custom_call.1} parent=27 // pred_fallthru
          _
      $region28: #{tpu_custom_call.1} parent=5 // pred_fallthru
        _
      %p401 = scmp.le.s32.totalorder 2, %s17
      // Predicated region
      $region57: #{tpu_custom_call.1} parent=5 // pred_check
        %p402 = pneg %p401
      $region58: #{tpu_custom_call.1} parent=5 // pred_check_branch
        %404 = sbr.rel (%p402) target = $region60
      $region59: #{tpu_custom_call.1} parent=5 // pred_region
        %s405 = ssub.s32 %s17, 2
        // Predicated region
        $region61: #{tpu_custom_call.1} parent=59 // pred_check
          %p406 = pneg %p114
        $region62: #{tpu_custom_call.1} parent=59 // pred_check_branch
          %408 = sbr.rel (%p406) target = $region64
        $region63: #{tpu_custom_call.1} parent=59 // pred_region
          %p409 = scmp.lt.s32.totalorder %s28, 1
          %s410 = scalar_select %p409, %s28, 1
          %s411 = smul.addr %s410, 4
          %s412 = scalar_lea.vmem %s2, %s411
        $region64: #{tpu_custom_call.1} parent=59 // pred_fallthru
          _
        // Predicated region
        $region65: #{tpu_custom_call.1} parent=59 // pred_check
          %p413 = pneg %p140
        $region66: #{tpu_custom_call.1} parent=59 // pred_check_branch
          %415 = sbr.rel (%p413) target = $region68
        $region67: #{tpu_custom_call.1} parent=59 // pred_region
          %p416 = scmp.lt.s32.totalorder %s28, 1
          %s417 = scalar_select %p416, %s28, 1
          %s418 = smul.addr %s417, 4
          %s419 = scalar_lea.vmem %s3, %s418
        $region68: #{tpu_custom_call.1} parent=59 // pred_fallthru
          _
        // Predicated region
        $region69: #{tpu_custom_call.1} parent=59 // pred_check
          %p420 = pneg %p166
        $region70: #{tpu_custom_call.1} parent=59 // pred_check_branch
          %422 = sbr.rel (%p420) target = $region72
        $region71: #{tpu_custom_call.1} parent=59 // pred_region
          %p423 = scmp.lt.s32.totalorder %s28, 1
          %s424 = scalar_select %p423, %s28, 1
          %s425 = smul.addr %s424, 4
          %s426 = scalar_lea.vmem %s4, %s425
        $region72: #{tpu_custom_call.1} parent=59 // pred_fallthru
          _
      $region60: #{tpu_custom_call.1} parent=5 // pred_fallthru
        _
    $region6: #{tpu_custom_call.1} parent=1 // loop_footer
      %s21 = sadd.s32 1, %s17
    $region7: #{tpu_custom_call.1} parent=1 // loop_footer_branch
      %16 = sbr.rel target = $region3
    $region8: #{tpu_custom_call.1} parent=1 // loop_exit
      _
    %427 = vsyncpa [#allocation6], 1
    %s428 = scalar_lea.sflag [#allocation6], 1
    %429 = vsyncpa %s428, 1
    %430 = vsyncpa [#allocation8], 1
    %s431 = scalar_lea.sflag [#allocation8], 1
    %432 = vsyncpa %s431, 1

</llo_original>
